<compile_context>
chip_gen: v7x
topology: tpu7x:2x2x1
jax: 0.10.0
libtpu: 0.0.40
codegen_flags: <defaults>
</compile_context>

<pallas_src>
import numpy as np
import jax
import jax.numpy as jnp
from jax.experimental import pallas as pl
from jax.experimental.pallas import tpu as pltpu  # noqa: F401  (TPU backend)


# ======================= Pallas kernels =======================

def _attention_mil_kernel(f_ref, wv_ref, bv_ref, wu_ref, bu_ref, ww_ref, bw_ref,
                          emb_ref, att_ref):
    """Fused attentionMIL aggregation (single VMEM-resident block).

    f: (N, L); Wv/Wu: (L, D); bv/bu: (1, D); Ww: (D, K); bw: (1, K)
    emb out: (K, L)  -- lane-dense; equals (feats^T @ softmax(w_logits))^T
    att out: (N, K)  -- softmax(w_logits) over dim 0 (the instance axis)
    """
    f = f_ref[...]                                                         # (N, L)
    a_v = jnp.tanh(jnp.dot(f, wv_ref[...], preferred_element_type=jnp.float32)
                   + bv_ref[...])                                          # (N, D)
    a_u = jax.nn.sigmoid(jnp.dot(f, wu_ref[...], preferred_element_type=jnp.float32)
                         + bu_ref[...])                                    # (N, D)
    w_logits = (jnp.dot(a_v * a_u, ww_ref[...], preferred_element_type=jnp.float32)
                + bw_ref[...])                                             # (N, K)

    # softmax over the instance axis (dim 0), max-subtracted for stability
    m = jnp.max(w_logits, axis=0, keepdims=True)                           # (1, K)
    e = jnp.exp(w_logits - m)
    att = e / jnp.sum(e, axis=0, keepdims=True)                            # (N, K)
    att_ref[...] = att

    # embedding[k, :] = sum_n att[n, k] * f[n, :]   (== (feats^T @ att)^T, lane-dense)
    k_heads = att.shape[1]
    rows = [jnp.sum(att[:, k:k + 1] * f, axis=0, keepdims=True) for k in range(k_heads)]
    emb_ref[...] = jnp.concatenate(rows, axis=0)                           # (K, L)


def _max_kernel(f_ref, o_ref):
    o_ref[...] = jnp.max(f_ref[...], axis=0, keepdims=True)                # (1, L)


def _mean_kernel(f_ref, o_ref):
    o_ref[...] = jnp.mean(f_ref[...], axis=0, keepdims=True)               # (1, L)


# ======================= wrappers =======================

def attention_mil_aggregate(feats, params):
    """Returns (embedding (L,) , softmax(w_logits, dim=0) (N, K)) -- matches
    MILAggregation.forward for aggregation='attentionMIL'."""
    n, l = feats.shape
    d = params["wv"].shape[1]
    k = params["ww"].shape[1]
    assert k == 1, "reference module hardcodes attentionMIL(L, D, 1)"

    flops = (2 * n * l * d) * 2 + n * d + 2 * n * d * k + 5 * n * k + 2 * n * l * k
    transcendentals = 2 * n * d + n * k
    bytes_accessed = 4 * (n * l + 2 * (l * d + d) + d * k + k + k * l + n * k)

    emb, att = pl.pallas_call(
        _attention_mil_kernel,
        out_shape=(jax.ShapeDtypeStruct((k, l), jnp.float32),    # embedding (lane-dense)
                   jax.ShapeDtypeStruct((n, k), jnp.float32)),   # attention weights
        cost_estimate=pl.CostEstimate(flops=flops,
                                      transcendentals=transcendentals,
                                      bytes_accessed=bytes_accessed),
    )(feats, params["wv"], params["bv"], params["wu"], params["bu"],
      params["ww"], params["bw"])
    return jnp.squeeze(emb), att                                 # (L,), (N, K)


def mil_aggregation_forward(feats, params, aggregation="attentionMIL"):
    n, l = feats.shape
    if aggregation == "max":
        out = pl.pallas_call(
            _max_kernel, out_shape=jax.ShapeDtypeStruct((1, l), jnp.float32))(feats)
        return out[0]
    if aggregation == "mean":
        out = pl.pallas_call(
            _mean_kernel, out_shape=jax.ShapeDtypeStruct((1, l), jnp.float32))(feats)
        return out[0]
    if aggregation == "attentionMIL":
        return attention_mil_aggregate(feats, params)
    raise ValueError(f"unknown aggregation: {aggregation}")


# ======================= parameter init (deterministic, Linear-style) =======================

def init_params(key, L, D, K=1):
    ks = jax.random.split(key, 6)
    sl, sd = 1.0 / np.sqrt(L), 1.0 / np.sqrt(D)
    return {
        "wv": jax.random.uniform(ks[0], (L, D), jnp.float32, -sl, sl),
        "bv": jax.random.uniform(ks[1], (1, D), jnp.float32, -sl, sl),
        "wu": jax.random.uniform(ks[2], (L, D), jnp.float32, -sl, sl),
        "bu": jax.random.uniform(ks[3], (1, D), jnp.float32, -sl, sl),
        "ww": jax.random.uniform(ks[4], (D, K), jnp.float32, -sd, sd),
        "bw": jax.random.uniform(ks[5], (1, K), jnp.float32, -sd, sd),
    }


# ======================= pure-JAX reference (for verification) =======================

def reference_forward(feats, params, aggregation="attentionMIL"):
    if aggregation == "max":
        return jnp.max(feats, axis=0)
    if aggregation == "mean":
        return jnp.mean(feats, axis=0)
    a_v = jnp.tanh(feats @ params["wv"] + params["bv"])
    a_u = jax.nn.sigmoid(feats @ params["wu"] + params["bu"])
    w_logits = (a_v * a_u) @ params["ww"] + params["bw"]
    att = jax.nn.softmax(w_logits, axis=0)
    embedding = jnp.squeeze(feats.T @ att)
    return embedding, att


# ======================= main =======================

if __name__ == "__main__":
    key = jax.random.PRNGKey(0)
    kf, kp = jax.random.split(key)

    N, L, D, K = 8, 512, 128, 1                 # bag of 8 instance features, L=512, D=128
    feats = jax.random.normal(kf, (N, L), jnp.float32)
    params = init_params(kp, L, D, K)

    emb, att = mil_aggregation_forward(feats, params, "attentionMIL")
    emb_max = mil_aggregation_forward(feats, params, "max")
    emb_mean = mil_aggregation_forward(feats, params, "mean")
    jax.block_until_ready((emb, att, emb_max, emb_mean))

    # shape checks (match torch semantics: squeeze -> (L,); softmax weights (N, K))
    assert emb.shape == (L,), emb.shape
    assert att.shape == (N, K), att.shape
    assert emb_max.shape == (L,) and emb_mean.shape == (L,)

    # numerical checks against pure-JAX reference
    ref_emb, ref_att = reference_forward(feats, params, "attentionMIL")
    assert np.allclose(np.asarray(att), np.asarray(ref_att), rtol=1e-2, atol=1e-2)
    assert np.allclose(np.asarray(emb), np.asarray(ref_emb), rtol=1e-2, atol=1e-2)
    assert np.isclose(float(jnp.sum(att)), 1.0, atol=1e-4)
    assert np.allclose(np.asarray(emb_max), np.asarray(jnp.max(feats, axis=0)),
                       rtol=1e-5, atol=1e-5)
    assert np.allclose(np.asarray(emb_mean), np.asarray(jnp.mean(feats, axis=0)),
                       rtol=1e-5, atol=1e-5)
    assert bool(jnp.all(jnp.isfinite(emb))) and bool(jnp.all(jnp.isfinite(att)))

    print("KERNEL_OK")
</pallas_src>

<mosaic_0001>
module attributes {stable_mosaic.version = 11 : i64} {
  func.func @_attention_mil_kernel(%arg0: memref<8x512xf32, #tpu.memory_space<vmem>>, %arg1: memref<512x128xf32, #tpu.memory_space<vmem>>, %arg2: memref<1x128xf32, #tpu.memory_space<vmem>>, %arg3: memref<512x128xf32, #tpu.memory_space<vmem>>, %arg4: memref<1x128xf32, #tpu.memory_space<vmem>>, %arg5: memref<128x1xf32, #tpu.memory_space<vmem>>, %arg6: memref<1x1xf32, #tpu.memory_space<vmem>>, %arg7: memref<1x512xf32, #tpu.memory_space<vmem>>, %arg8: memref<8x1xf32, #tpu.memory_space<vmem>>) attributes {dimension_semantics = [], scalar_prefetch = 0 : i64, scratch_operands = 0 : i64, tpu.core_type = #tpu.core_type<tc>} {
    %c0 = arith.constant 0 : index
    %c0_0 = arith.constant 0 : index
    %0 = vector.load %arg0[%c0, %c0_0] : memref<8x512xf32, #tpu.memory_space<vmem>>, vector<8x512xf32>
    %c0_1 = arith.constant 0 : index
    %c0_2 = arith.constant 0 : index
    %1 = vector.load %arg1[%c0_1, %c0_2] : memref<512x128xf32, #tpu.memory_space<vmem>>, vector<512x128xf32>
    %cst = arith.constant dense<0.000000e+00> : vector<8x128xf32>
    %2 = tpu.matmul %0, %1, %cst {dimension_numbers = #tpu.dot_dimension_numbers<[1], [0], [0], [1], [0, 0, 1, 1], [], []>} : vector<8x512xf32>, vector<512x128xf32>, vector<8x128xf32> -> vector<8x128xf32>
    %c0_3 = arith.constant 0 : index
    %c0_4 = arith.constant 0 : index
    %3 = vector.load %arg2[%c0_3, %c0_4] : memref<1x128xf32, #tpu.memory_space<vmem>>, vector<1x128xf32>
    %4 = vector.broadcast %3 : vector<1x128xf32> to vector<8x128xf32>
    %5 = arith.addf %2, %4 : vector<8x128xf32>
    %6 = math.tanh %5 : vector<8x128xf32>
    %c0_5 = arith.constant 0 : index
    %c0_6 = arith.constant 0 : index
    %7 = vector.load %arg3[%c0_5, %c0_6] : memref<512x128xf32, #tpu.memory_space<vmem>>, vector<512x128xf32>
    %cst_7 = arith.constant dense<0.000000e+00> : vector<8x128xf32>
    %8 = tpu.matmul %0, %7, %cst_7 {dimension_numbers = #tpu.dot_dimension_numbers<[1], [0], [0], [1], [0, 0, 1, 1], [], []>} : vector<8x512xf32>, vector<512x128xf32>, vector<8x128xf32> -> vector<8x128xf32>
    %c0_8 = arith.constant 0 : index
    %c0_9 = arith.constant 0 : index
    %9 = vector.load %arg4[%c0_8, %c0_9] : memref<1x128xf32, #tpu.memory_space<vmem>>, vector<1x128xf32>
    %10 = vector.broadcast %9 : vector<1x128xf32> to vector<8x128xf32>
    %11 = arith.addf %8, %10 : vector<8x128xf32>
    %12 = arith.negf %11 : vector<8x128xf32>
    %13 = math.exp %12 : vector<8x128xf32>
    %cst_10 = arith.constant 1.000000e+00 : f32
    %14 = vector.broadcast %cst_10 : f32 to vector<8x128xf32>
    %15 = arith.addf %14, %13 : vector<8x128xf32>
    %16 = arith.divf %14, %15 : vector<8x128xf32>
    %17 = arith.mulf %6, %16 : vector<8x128xf32>
    %c0_11 = arith.constant 0 : index
    %c0_12 = arith.constant 0 : index
    %18 = vector.load %arg5[%c0_11, %c0_12] : memref<128x1xf32, #tpu.memory_space<vmem>>, vector<128x1xf32>
    %cst_13 = arith.constant dense<0.000000e+00> : vector<8x1xf32>
    %19 = tpu.matmul %17, %18, %cst_13 {dimension_numbers = #tpu.dot_dimension_numbers<[1], [0], [0], [1], [0, 0, 1, 1], [], []>} : vector<8x128xf32>, vector<128x1xf32>, vector<8x1xf32> -> vector<8x1xf32>
    %c0_14 = arith.constant 0 : index
    %c0_15 = arith.constant 0 : index
    %20 = vector.load %arg6[%c0_14, %c0_15] : memref<1x1xf32, #tpu.memory_space<vmem>>, vector<1x1xf32>
    %21 = vector.broadcast %20 : vector<1x1xf32> to vector<8x1xf32>
    %22 = arith.addf %19, %21 : vector<8x1xf32>
    %cst_16 = arith.constant dense<0xFF800000> : vector<1xf32>
    %23 = vector.multi_reduction <maximumf>, %22, %cst_16 [0] : vector<8x1xf32> to vector<1xf32>
    %24 = vector.shape_cast %23 : vector<1xf32> to vector<1x1xf32>
    %25 = vector.broadcast %24 : vector<1x1xf32> to vector<8x1xf32>
    %26 = arith.subf %22, %25 : vector<8x1xf32>
    %27 = math.exp %26 : vector<8x1xf32>
    %cst_17 = arith.constant dense<0.000000e+00> : vector<1xf32>
    %28 = vector.multi_reduction <add>, %27, %cst_17 [0] : vector<8x1xf32> to vector<1xf32>
    %29 = vector.shape_cast %28 : vector<1xf32> to vector<1x1xf32>
    %30 = vector.broadcast %29 : vector<1x1xf32> to vector<8x1xf32>
    %31 = arith.divf %27, %30 : vector<8x1xf32>
    %c0_18 = arith.constant 0 : index
    %c0_19 = arith.constant 0 : index
    %32 = vector.load %arg8[%c0_18, %c0_19] : memref<8x1xf32, #tpu.memory_space<vmem>>, vector<8x1xf32>
    tpu.vector_store %arg8[%c0_18, %c0_19], %31 {strides = array<i32>} : memref<8x1xf32, #tpu.memory_space<vmem>>, vector<8x1xf32>,
    %33 = vector.broadcast %31 : vector<8x1xf32> to vector<8x512xf32>
    %34 = arith.mulf %33, %0 : vector<8x512xf32>
    %cst_20 = arith.constant dense<0.000000e+00> : vector<512xf32>
    %35 = vector.multi_reduction <add>, %34, %cst_20 [0] : vector<8x512xf32> to vector<512xf32>
    %36 = vector.shape_cast %35 : vector<512xf32> to vector<1x512xf32>
    %c0_21 = arith.constant 0 : index
    %c0_22 = arith.constant 0 : index
    %37 = vector.load %arg7[%c0_21, %c0_22] : memref<1x512xf32, #tpu.memory_space<vmem>>, vector<1x512xf32>
    tpu.vector_store %arg7[%c0_21, %c0_22], %36 {strides = array<i32>} : memref<1x512xf32, #tpu.memory_space<vmem>>, vector<1x512xf32>,
    return
  }
}

</mosaic_0001>

<llo_original>
// kernel: tpu_custom_call.1
$region0: #{tpu_custom_call.1}
  #allocation0 [shape = 'u32[]', space=smem, size = 0x4, offset = 0x4, fixed_abs, tag = 'smem constant byte address 0x4 - core index']
  #allocation1 [shape = 'u32[144,128]{1,0:T(1,128)}', space=vmem, size = 0x12000, scoped, tag = 'internal scratch']
  #allocation2 [shape = 'f32[1,1]{1,0:T(1,128)S(1)}', space=vmem, size = 0x200, scoped, tag = 'scoped memory for tpu_custom_call.1']
  %s0 = inlined_call_operand.vmem [shape: f32[8,512], index: 0, kind: input, shape index: {}]
  %s1 = inlined_call_operand.hbm [shape: f32[512,128], index: 1, kind: input, shape index: {}]
  %s2 = inlined_call_operand.vmem [shape: f32[1,128], index: 2, kind: input, shape index: {}]
  %s3 = inlined_call_operand.hbm [shape: f32[512,128], index: 3, kind: input, shape index: {}]
  %s4 = inlined_call_operand.vmem [shape: f32[1,128], index: 4, kind: input, shape index: {}]
  %s5 = inlined_call_operand.vmem [shape: f32[128,1], index: 5, kind: input, shape index: {}]
  %s6 = inlined_call_operand.<no memory space> [shape: f32[1,1], index: 6, kind: input, shape index: {}]
  %s7 = inlined_call_operand.hbm [shape: f32[1,512], index: 7, kind: output, shape index: {0}]
  %s8 = inlined_call_operand.vmem [shape: f32[8,1], index: 8, kind: output, shape index: {1}]
  %9 = xla_tuple %s7, %s8
  %s10 = sld [smem:[#allocation0]]
  $region54: #{tpu_custom_call.1} parent=0
    _
  %s12 = ssub.s32 1, %s10
  %s13 = scalar_select 0, %s12, %s10
  %v14 = vstv %s6
  %15 = vst [vmem:[#allocation2] sm:$0x1] %v14
  $region1: #{tpu_custom_call.1} parent=0
    #allocation3 [shape = 'u8[262144]{0}', space=vmem, size = 0x40000, scoped, tag = 'input window, operand 1, single buffered']
    #allocation4 [shape = 's32[1]{0}', space=sflag, size = 0x4, scoped, tag = 'scoped memory for tpu_custom_call.1']
    #allocation5 [shape = 's32[1]{0}', space=sflag, size = 0x4, scoped, tag = 'scoped memory for tpu_custom_call.1']
    #allocation6 [shape = 'u8[262144]{0}', space=vmem, size = 0x40000, scoped, tag = 'input window, operand 3, single buffered']
    #allocation7 [shape = 's32[1]{0}', space=sflag, size = 0x4, scoped, tag = 'scoped memory for tpu_custom_call.1']
    #allocation8 [shape = 'u8[2048]{0}', space=vmem, size = 0x800, scoped, tag = 'output window, operand 0, single buffered']
    %16 = vsyncpa [#allocation4], 0
    %17 = vsyncpa [#allocation7], 0
    %18 = vsyncpa [#allocation5], 0
    // Predicated region
    $region2: #{tpu_custom_call.1} parent=1 // pred_check
      _
    $region3: #{tpu_custom_call.1} parent=1 // pred_check_branch
      %20 = sbr.rel (0) target = $region5
    $region4: #{tpu_custom_call.1} parent=1 // pred_region
      _
    $region5: #{tpu_custom_call.1} parent=1 // pred_fallthru
      _
    // Predicated region
    $region6: #{tpu_custom_call.1} parent=1 // pred_check
      _
    $region7: #{tpu_custom_call.1} parent=1 // pred_check_branch
      %22 = sbr.rel (0) target = $region9
    $region8: #{tpu_custom_call.1} parent=1 // pred_region
      %s24 = ssub.s32 8192, 8192
      %25 = vsyncadd [#allocation4], %s24
      %s26 = sshll.u32 [#allocation3], 4
      %s27 = int_to_ptr.vmem [resolvable:$true] %s26
      %32 = dma.hbm_to_vmem [thread:$0]  %s1, 8192, %s27, [#allocation4], 128, 128, 8
    $region9: #{tpu_custom_call.1} parent=1 // pred_fallthru
      _
    // Predicated region
    $region10: #{tpu_custom_call.1} parent=1 // pred_check
      _
    $region11: #{tpu_custom_call.1} parent=1 // pred_check_branch
      %34 = sbr.rel (0) target = $region13
    $region12: #{tpu_custom_call.1} parent=1 // pred_region
      _
    $region13: #{tpu_custom_call.1} parent=1 // pred_fallthru
      _
    // Predicated region
    $region14: #{tpu_custom_call.1} parent=1 // pred_check
      _
    $region15: #{tpu_custom_call.1} parent=1 // pred_check_branch
      %36 = sbr.rel (0) target = $region17
    $region16: #{tpu_custom_call.1} parent=1 // pred_region
      %s38 = ssub.s32 8192, 8192
      %39 = vsyncadd [#allocation7], %s38
      %s40 = sshll.u32 [#allocation6], 4
      %s41 = int_to_ptr.vmem [resolvable:$true] %s40
      %46 = dma.hbm_to_vmem [thread:$0]  %s3, 8192, %s41, [#allocation7], 128, 128, 8
    $region17: #{tpu_custom_call.1} parent=1 // pred_fallthru
      _
    // Predicated region
    $region18: #{tpu_custom_call.1} parent=1 // pred_check
      _
    $region19: #{tpu_custom_call.1} parent=1 // pred_check_branch
      %48 = sbr.rel (0) target = $region21
    $region20: #{tpu_custom_call.1} parent=1 // pred_region
      _
    $region21: #{tpu_custom_call.1} parent=1 // pred_fallthru
      _
    // Predicated region
    $region22: #{tpu_custom_call.1} parent=1 // pred_check
      _
    $region23: #{tpu_custom_call.1} parent=1 // pred_check_branch
      %50 = sbr.rel (0) target = $region25
    $region24: #{tpu_custom_call.1} parent=1 // pred_region
      _
    $region25: #{tpu_custom_call.1} parent=1 // pred_fallthru
      _
    // Predicated region
    $region26: #{tpu_custom_call.1} parent=1 // pred_check
      _
    $region27: #{tpu_custom_call.1} parent=1 // pred_check_branch
      %52 = sbr.rel (0) target = $region29
    $region28: #{tpu_custom_call.1} parent=1 // pred_region
      _
    $region29: #{tpu_custom_call.1} parent=1 // pred_fallthru
      _
    // Predicated region
    $region30: #{tpu_custom_call.1} parent=1 // pred_check
      _
    $region31: #{tpu_custom_call.1} parent=1 // pred_check_branch
      %54 = sbr.rel (0) target = $region33
    $region32: #{tpu_custom_call.1} parent=1 // pred_region
      %55 = dma.done [#allocation4], 8192
    $region33: #{tpu_custom_call.1} parent=1 // pred_fallthru
      _
    // Predicated region
    $region34: #{tpu_custom_call.1} parent=1 // pred_check
      _
    $region35: #{tpu_custom_call.1} parent=1 // pred_check_branch
      %57 = sbr.rel (0) target = $region37
    $region36: #{tpu_custom_call.1} parent=1 // pred_region
      %58 = dma.done [#allocation7], 8192
    $region37: #{tpu_custom_call.1} parent=1 // pred_fallthru
      _
    %v59 = vld [vmem:[%s0] sm:$0xff]
    %v60 = vld [vmem:[%s0 + $0x8] sm:$0xff]
    %v61 = vld [vmem:[%s0 + $0x10] sm:$0xff]
    %v62 = vld [vmem:[%s0 + $0x18] sm:$0xff]
    %v63 = vld [vmem:[#allocation3] sm:$0xff]
    %v64 = vld [vmem:[#allocation3 + $0x8] sm:$0xff]
    %v65 = vld [vmem:[#allocation3 + $0x10] sm:$0xff]
    %v66 = vld [vmem:[#allocation3 + $0x18] sm:$0xff]
    %v67 = vld [vmem:[#allocation3 + $0x20] sm:$0xff]
    %v68 = vld [vmem:[#allocation3 + $0x28] sm:$0xff]
    %v69 = vld [vmem:[#allocation3 + $0x30] sm:$0xff]
    %v70 = vld [vmem:[#allocation3 + $0x38] sm:$0xff]
    %v71 = vld [vmem:[#allocation3 + $0x40] sm:$0xff]
    %v72 = vld [vmem:[#allocation3 + $0x48] sm:$0xff]
    %v73 = vld [vmem:[#allocation3 + $0x50] sm:$0xff]
    %v74 = vld [vmem:[#allocation3 + $0x58] sm:$0xff]
    %v75 = vld [vmem:[#allocation3 + $0x60] sm:$0xff]
    %v76 = vld [vmem:[#allocation3 + $0x68] sm:$0xff]
    %v77 = vld [vmem:[#allocation3 + $0x70] sm:$0xff]
    %v78 = vld [vmem:[#allocation3 + $0x78] sm:$0xff]
    %v79 = vld [vmem:[#allocation3 + $0x80] sm:$0xff]
    %v80 = vld [vmem:[#allocation3 + $0x88] sm:$0xff]
    %v81 = vld [vmem:[#allocation3 + $0x90] sm:$0xff]
    %v82 = vld [vmem:[#allocation3 + $0x98] sm:$0xff]
    %v83 = vld [vmem:[#allocation3 + $0xa0] sm:$0xff]
    %v84 = vld [vmem:[#allocation3 + $0xa8] sm:$0xff]
    %v85 = vld [vmem:[#allocation3 + $0xb0] sm:$0xff]
    %v86 = vld [vmem:[#allocation3 + $0xb8] sm:$0xff]
    %v87 = vld [vmem:[#allocation3 + $0xc0] sm:$0xff]
    %v88 = vld [vmem:[#allocation3 + $0xc8] sm:$0xff]
    %v89 = vld [vmem:[#allocation3 + $0xd0] sm:$0xff]
    %v90 = vld [vmem:[#allocation3 + $0xd8] sm:$0xff]
    %v91 = vld [vmem:[#allocation3 + $0xe0] sm:$0xff]
    %v92 = vld [vmem:[#allocation3 + $0xe8] sm:$0xff]
    %v93 = vld [vmem:[#allocation3 + $0xf0] sm:$0xff]
    %v94 = vld [vmem:[#allocation3 + $0xf8] sm:$0xff]
    %v95 = vld [vmem:[#allocation3 + $0x100] sm:$0xff]
    %v96 = vld [vmem:[#allocation3 + $0x108] sm:$0xff]
    %v97 = vld [vmem:[#allocation3 + $0x110] sm:$0xff]
    %v98 = vld [vmem:[#allocation3 + $0x118] sm:$0xff]
    %v99 = vld [vmem:[#allocation3 + $0x120] sm:$0xff]
    %v100 = vld [vmem:[#allocation3 + $0x128] sm:$0xff]
    %v101 = vld [vmem:[#allocation3 + $0x130] sm:$0xff]
    %v102 = vld [vmem:[#allocation3 + $0x138] sm:$0xff]
    %v103 = vld [vmem:[#allocation3 + $0x140] sm:$0xff]
    %v104 = vld [vmem:[#allocation3 + $0x148] sm:$0xff]
    %v105 = vld [vmem:[#allocation3 + $0x150] sm:$0xff]
    %v106 = vld [vmem:[#allocation3 + $0x158] sm:$0xff]
    %v107 = vld [vmem:[#allocation3 + $0x160] sm:$0xff]
    %v108 = vld [vmem:[#allocation3 + $0x168] sm:$0xff]
    %v109 = vld [vmem:[#allocation3 + $0x170] sm:$0xff]
    %v110 = vld [vmem:[#allocation3 + $0x178] sm:$0xff]
    %v111 = vld [vmem:[#allocation3 + $0x180] sm:$0xff]
    %v112 = vld [vmem:[#allocation3 + $0x188] sm:$0xff]
    %v113 = vld [vmem:[#allocation3 + $0x190] sm:$0xff]
    %v114 = vld [vmem:[#allocation3 + $0x198] sm:$0xff]
    %v115 = vld [vmem:[#allocation3 + $0x1a0] sm:$0xff]
    %v116 = vld [vmem:[#allocation3 + $0x1a8] sm:$0xff]
    %v117 = vld [vmem:[#allocation3 + $0x1b0] sm:$0xff]
    %v118 = vld [vmem:[#allocation3 + $0x1b8] sm:$0xff]
    %v119 = vld [vmem:[#allocation3 + $0x1c0] sm:$0xff]
    %v120 = vld [vmem:[#allocation3 + $0x1c8] sm:$0xff]
    %v121 = vld [vmem:[#allocation3 + $0x1d0] sm:$0xff]
    %v122 = vld [vmem:[#allocation3 + $0x1d8] sm:$0xff]
    %v123 = vld [vmem:[#allocation3 + $0x1e0] sm:$0xff]
    %v124 = vld [vmem:[#allocation3 + $0x1e8] sm:$0xff]
    %v125 = vld [vmem:[#allocation3 + $0x1f0] sm:$0xff]
    %v126 = vld [vmem:[#allocation3 + $0x1f8] sm:$0xff]
    %v127 = vld [vmem:[%s2] sm:$0x1]
    %v129 = vlaneseq
    %v130 = vshrl.u32 %v129, 7
    %v131 = vsub.s32 0, %v130
    %v132 = vrot.slane %v127, %v131
    %134 = vmatprep.subr.mxu0 0.0
    %135 = vmatpush1.msra.mxu0 %v63
    %136 = vmatprep.subr.mxu0 0.0
    %137 = vmatpush1.msra.mxu0 %v64
    %138 = vmatprep.subr.mxu0 0.0
    %139 = vmatpush1.msra.mxu0 %v65
    %140 = vmatprep.subr.mxu0 0.0
    %141 = vmatpush1.msra.mxu0 %v66
    %142 = vmatprep.subr.mxu0 0.0
    %143 = vmatpush1.msra.mxu0 %v67
    %144 = vmatprep.subr.mxu0 0.0
    %145 = vmatpush1.msra.mxu0 %v68
    %146 = vmatprep.subr.mxu0 0.0
    %147 = vmatpush1.msra.mxu0 %v69
    %148 = vmatprep.subr.mxu0 0.0
    %149 = vmatpush1.msra.mxu0 %v70
    %150 = vmatprep.subr.mxu0 0.0
    %151 = vmatpush1.msra.mxu0 %v71
    %152 = vmatprep.subr.mxu0 0.0
    %153 = vmatpush1.msra.mxu0 %v72
    %154 = vmatprep.subr.mxu0 0.0
    %155 = vmatpush1.msra.mxu0 %v73
    %156 = vmatprep.subr.mxu0 0.0
    %157 = vmatpush1.msra.mxu0 %v74
    %158 = vmatprep.subr.mxu0 0.0
    %159 = vmatpush1.msra.mxu0 %v75
    %160 = vmatprep.subr.mxu0 0.0
    %161 = vmatpush1.msra.mxu0 %v76
    %162 = vmatprep.subr.mxu0 0.0
    %163 = vmatpush1.msra.mxu0 %v77
    %164 = vmatprep.subr.mxu0 0.0
    %165 = vmatpush1.msra.mxu0 %v78
    %166 = vmatprep.subr.mxu0 0.0
    %167 = vmatpush1.msra.mxu0 %v79
    %168 = vmatprep.subr.mxu0 0.0
    %169 = vmatpush1.msra.mxu0 %v80
    %170 = vmatprep.subr.mxu0 0.0
    %171 = vmatpush1.msra.mxu0 %v81
    %172 = vmatprep.subr.mxu0 0.0
    %173 = vmatpush1.msra.mxu0 %v82
    %174 = vmatprep.subr.mxu0 0.0
    %175 = vmatpush1.msra.mxu0 %v83
    %176 = vmatprep.subr.mxu0 0.0
    %177 = vmatpush1.msra.mxu0 %v84
    %178 = vmatprep.subr.mxu0 0.0
    %179 = vmatpush1.msra.mxu0 %v85
    %180 = vmatprep.subr.mxu0 0.0
    %181 = vmatpush1.msra.mxu0 %v86
    %182 = vmatprep.subr.mxu0 0.0
    %183 = vmatpush1.msra.mxu0 %v87
    %184 = vmatprep.subr.mxu0 0.0
    %185 = vmatpush1.msra.mxu0 %v88
    %186 = vmatprep.subr.mxu0 0.0
    %187 = vmatpush1.msra.mxu0 %v89
    %188 = vmatprep.subr.mxu0 0.0
    %189 = vmatpush1.msra.mxu0 %v90
    %190 = vmatprep.subr.mxu0 0.0
    %191 = vmatpush1.msra.mxu0 %v91
    %192 = vmatprep.subr.mxu0 0.0
    %193 = vmatpush1.msra.mxu0 %v92
    %194 = vmatprep.subr.mxu0 0.0
    %195 = vmatpush1.msra.mxu0 %v93
    %196 = vmatprep.subr.mxu0 0.0
    %197 = vmatpush1.msra.mxu0 %v94
    %198 = vmatprep.mubr.f32.mxu0 %v60
    %199 = vmatmul.mubr.f32.gmra.mrb[0].mxu0 %v59
    %v200 = vpop.f32.mrb[0].mxu0
    %v201 = vadd.f32 %v132, %v200
    %v202 = vpop.f32.mrb[0].mxu0
    %203 = vdwg.mxu0
    %204 = vmatprep.subr.mxu0 0.0
    %205 = vmatpush1.msra.mxu0 %v95
    %206 = vmatprep.subr.mxu0 0.0
    %207 = vmatpush1.msra.mxu0 %v96
    %208 = vmatprep.subr.mxu0 0.0
    %209 = vmatpush1.msra.mxu0 %v97
    %210 = vmatprep.subr.mxu0 0.0
    %211 = vmatpush1.msra.mxu0 %v98
    %212 = vmatprep.subr.mxu0 0.0
    %213 = vmatpush1.msra.mxu0 %v99
    %214 = vmatprep.subr.mxu0 0.0
    %215 = vmatpush1.msra.mxu0 %v100
    %216 = vmatprep.subr.mxu0 0.0
    %217 = vmatpush1.msra.mxu0 %v101
    %218 = vmatprep.subr.mxu0 0.0
    %219 = vmatpush1.msra.mxu0 %v102
    %220 = vmatprep.subr.mxu0 0.0
    %221 = vmatpush1.msra.mxu0 %v103
    %222 = vmatprep.subr.mxu0 0.0
    %223 = vmatpush1.msra.mxu0 %v104
    %224 = vmatprep.subr.mxu0 0.0
    %225 = vmatpush1.msra.mxu0 %v105
    %226 = vmatprep.subr.mxu0 0.0
    %227 = vmatpush1.msra.mxu0 %v106
    %228 = vmatprep.subr.mxu0 0.0
    %229 = vmatpush1.msra.mxu0 %v107
    %230 = vmatprep.subr.mxu0 0.0
    %231 = vmatpush1.msra.mxu0 %v108
    %232 = vmatprep.subr.mxu0 0.0
    %233 = vmatpush1.msra.mxu0 %v109
    %234 = vmatprep.subr.mxu0 0.0
    %235 = vmatpush1.msra.mxu0 %v110
    %236 = vmatprep.subr.mxu0 0.0
    %237 = vmatpush1.msra.mxu0 %v111
    %238 = vmatprep.subr.mxu0 0.0
    %239 = vmatpush1.msra.mxu0 %v112
    %240 = vmatprep.subr.mxu0 0.0
    %241 = vmatpush1.msra.mxu0 %v113
    %242 = vmatprep.subr.mxu0 0.0
    %243 = vmatpush1.msra.mxu0 %v114
    %244 = vmatprep.subr.mxu0 0.0
    %245 = vmatpush1.msra.mxu0 %v115
    %246 = vmatprep.subr.mxu0 0.0
    %247 = vmatpush1.msra.mxu0 %v116
    %248 = vmatprep.subr.mxu0 0.0
    %249 = vmatpush1.msra.mxu0 %v117
    %250 = vmatprep.subr.mxu0 0.0
    %251 = vmatpush1.msra.mxu0 %v118
    %252 = vmatprep.subr.mxu0 0.0
    %253 = vmatpush1.msra.mxu0 %v119
    %254 = vmatprep.subr.mxu0 0.0
    %255 = vmatpush1.msra.mxu0 %v120
    %256 = vmatprep.subr.mxu0 0.0
    %257 = vmatpush1.msra.mxu0 %v121
    %258 = vmatprep.subr.mxu0 0.0
    %259 = vmatpush1.msra.mxu0 %v122
    %260 = vmatprep.subr.mxu0 0.0
    %261 = vmatpush1.msra.mxu0 %v123
    %262 = vmatprep.subr.mxu0 0.0
    %263 = vmatpush1.msra.mxu0 %v124
    %264 = vmatprep.subr.mxu0 0.0
    %265 = vmatpush1.msra.mxu0 %v125
    %266 = vmatprep.subr.mxu0 0.0
    %267 = vmatpush1.msra.mxu0 %v126
    %268 = vmatprep.mubr.f32.mxu0 %v62
    %269 = vmatmul.mubr.f32.gmra.mrb[0].mxu0 %v61
    %v270 = vpop.f32.mrb[0].mxu0
    %v271 = vadd.f32 %v201, %v270
    %v272 = vpop.f32.mrb[0].mxu0
    %273 = vdwg.mxu0
    %v274 = vtanh.pop %v271
    %v275 = vld [vmem:[#allocation6] sm:$0xff]
    %v276 = vld [vmem:[#allocation6 + $0x8] sm:$0xff]
    %v277 = vld [vmem:[#allocation6 + $0x10] sm:$0xff]
    %v278 = vld [vmem:[#allocation6 + $0x18] sm:$0xff]
    %v279 = vld [vmem:[#allocation6 + $0x20] sm:$0xff]
    %v280 = vld [vmem:[#allocation6 + $0x28] sm:$0xff]
    %v281 = vld [vmem:[#allocation6 + $0x30] sm:$0xff]
    %v282 = vld [vmem:[#allocation6 + $0x38] sm:$0xff]
    %v283 = vld [vmem:[#allocation6 + $0x40] sm:$0xff]
    %v284 = vld [vmem:[#allocation6 + $0x48] sm:$0xff]
    %v285 = vld [vmem:[#allocation6 + $0x50] sm:$0xff]
    %v286 = vld [vmem:[#allocation6 + $0x58] sm:$0xff]
    %v287 = vld [vmem:[#allocation6 + $0x60] sm:$0xff]
    %v288 = vld [vmem:[#allocation6 + $0x68] sm:$0xff]
    %v289 = vld [vmem:[#allocation6 + $0x70] sm:$0xff]
    %v290 = vld [vmem:[#allocation6 + $0x78] sm:$0xff]
    %v291 = vld [vmem:[#allocation6 + $0x80] sm:$0xff]
    %v292 = vld [vmem:[#allocation6 + $0x88] sm:$0xff]
    %v293 = vld [vmem:[#allocation6 + $0x90] sm:$0xff]
    %v294 = vld [vmem:[#allocation6 + $0x98] sm:$0xff]
    %v295 = vld [vmem:[#allocation6 + $0xa0] sm:$0xff]
    %v296 = vld [vmem:[#allocation6 + $0xa8] sm:$0xff]
    %v297 = vld [vmem:[#allocation6 + $0xb0] sm:$0xff]
    %v298 = vld [vmem:[#allocation6 + $0xb8] sm:$0xff]
    %v299 = vld [vmem:[#allocation6 + $0xc0] sm:$0xff]
    %v300 = vld [vmem:[#allocation6 + $0xc8] sm:$0xff]
    %v301 = vld [vmem:[#allocation6 + $0xd0] sm:$0xff]
    %v302 = vld [vmem:[#allocation6 + $0xd8] sm:$0xff]
    %v303 = vld [vmem:[#allocation6 + $0xe0] sm:$0xff]
    %v304 = vld [vmem:[#allocation6 + $0xe8] sm:$0xff]
    %v305 = vld [vmem:[#allocation6 + $0xf0] sm:$0xff]
    %v306 = vld [vmem:[#allocation6 + $0xf8] sm:$0xff]
    %v307 = vld [vmem:[#allocation6 + $0x100] sm:$0xff]
    %v308 = vld [vmem:[#allocation6 + $0x108] sm:$0xff]
    %v309 = vld [vmem:[#allocation6 + $0x110] sm:$0xff]
    %v310 = vld [vmem:[#allocation6 + $0x118] sm:$0xff]
    %v311 = vld [vmem:[#allocation6 + $0x120] sm:$0xff]
    %v312 = vld [vmem:[#allocation6 + $0x128] sm:$0xff]
    %v313 = vld [vmem:[#allocation6 + $0x130] sm:$0xff]
    %v314 = vld [vmem:[#allocation6 + $0x138] sm:$0xff]
    %v315 = vld [vmem:[#allocation6 + $0x140] sm:$0xff]
    %v316 = vld [vmem:[#allocation6 + $0x148] sm:$0xff]
    %v317 = vld [vmem:[#allocation6 + $0x150] sm:$0xff]
    %v318 = vld [vmem:[#allocation6 + $0x158] sm:$0xff]
    %v319 = vld [vmem:[#allocation6 + $0x160] sm:$0xff]
    %v320 = vld [vmem:[#allocation6 + $0x168] sm:$0xff]
    %v321 = vld [vmem:[#allocation6 + $0x170] sm:$0xff]
    %v322 = vld [vmem:[#allocation6 + $0x178] sm:$0xff]
    %v323 = vld [vmem:[#allocation6 + $0x180] sm:$0xff]
    %v324 = vld [vmem:[#allocation6 + $0x188] sm:$0xff]
    %v325 = vld [vmem:[#allocation6 + $0x190] sm:$0xff]
    %v326 = vld [vmem:[#allocation6 + $0x198] sm:$0xff]
    %v327 = vld [vmem:[#allocation6 + $0x1a0] sm:$0xff]
    %v328 = vld [vmem:[#allocation6 + $0x1a8] sm:$0xff]
    %v329 = vld [vmem:[#allocation6 + $0x1b0] sm:$0xff]
    %v330 = vld [vmem:[#allocation6 + $0x1b8] sm:$0xff]
    %v331 = vld [vmem:[#allocation6 + $0x1c0] sm:$0xff]
    %v332 = vld [vmem:[#allocation6 + $0x1c8] sm:$0xff]
    %v333 = vld [vmem:[#allocation6 + $0x1d0] sm:$0xff]
    %v334 = vld [vmem:[#allocation6 + $0x1d8] sm:$0xff]
    %v335 = vld [vmem:[#allocation6 + $0x1e0] sm:$0xff]
    %v336 = vld [vmem:[#allocation6 + $0x1e8] sm:$0xff]
    %v337 = vld [vmem:[#allocation6 + $0x1f0] sm:$0xff]
    %v338 = vld [vmem:[#allocation6 + $0x1f8] sm:$0xff]
    %v339 = vld [vmem:[%s4] sm:$0x1]
    %v341 = vlaneseq
    %v342 = vshrl.u32 %v341, 7
    %v343 = vsub.s32 0, %v342
    %v344 = vrot.slane %v339, %v343
    %346 = vmatprep.subr.mxu0 0.0
    %347 = vmatpush1.msra.mxu0 %v275
    %348 = vmatprep.subr.mxu0 0.0
    %349 = vmatpush1.msra.mxu0 %v276
    %350 = vmatprep.subr.mxu0 0.0
    %351 = vmatpush1.msra.mxu0 %v277
    %352 = vmatprep.subr.mxu0 0.0
    %353 = vmatpush1.msra.mxu0 %v278
    %354 = vmatprep.subr.mxu0 0.0
    %355 = vmatpush1.msra.mxu0 %v279
    %356 = vmatprep.subr.mxu0 0.0
    %357 = vmatpush1.msra.mxu0 %v280
    %358 = vmatprep.subr.mxu0 0.0
    %359 = vmatpush1.msra.mxu0 %v281
    %360 = vmatprep.subr.mxu0 0.0
    %361 = vmatpush1.msra.mxu0 %v282
    %362 = vmatprep.subr.mxu0 0.0
    %363 = vmatpush1.msra.mxu0 %v283
    %364 = vmatprep.subr.mxu0 0.0
    %365 = vmatpush1.msra.mxu0 %v284
    %366 = vmatprep.subr.mxu0 0.0
    %367 = vmatpush1.msra.mxu0 %v285
    %368 = vmatprep.subr.mxu0 0.0
    %369 = vmatpush1.msra.mxu0 %v286
    %370 = vmatprep.subr.mxu0 0.0
    %371 = vmatpush1.msra.mxu0 %v287
    %372 = vmatprep.subr.mxu0 0.0
    %373 = vmatpush1.msra.mxu0 %v288
    %374 = vmatprep.subr.mxu0 0.0
    %375 = vmatpush1.msra.mxu0 %v289
    %376 = vmatprep.subr.mxu0 0.0
    %377 = vmatpush1.msra.mxu0 %v290
    %378 = vmatprep.subr.mxu0 0.0
    %379 = vmatpush1.msra.mxu0 %v291
    %380 = vmatprep.subr.mxu0 0.0
    %381 = vmatpush1.msra.mxu0 %v292
    %382 = vmatprep.subr.mxu0 0.0
    %383 = vmatpush1.msra.mxu0 %v293
    %384 = vmatprep.subr.mxu0 0.0
    %385 = vmatpush1.msra.mxu0 %v294
    %386 = vmatprep.subr.mxu0 0.0
    %387 = vmatpush1.msra.mxu0 %v295
    %388 = vmatprep.subr.mxu0 0.0
    %389 = vmatpush1.msra.mxu0 %v296
    %390 = vmatprep.subr.mxu0 0.0
    %391 = vmatpush1.msra.mxu0 %v297
    %392 = vmatprep.subr.mxu0 0.0
    %393 = vmatpush1.msra.mxu0 %v298
    %394 = vmatprep.subr.mxu0 0.0
    %395 = vmatpush1.msra.mxu0 %v299
    %396 = vmatprep.subr.mxu0 0.0
    %397 = vmatpush1.msra.mxu0 %v300
    %398 = vmatprep.subr.mxu0 0.0
    %399 = vmatpush1.msra.mxu0 %v301
    %400 = vmatprep.subr.mxu0 0.0
    %401 = vmatpush1.msra.mxu0 %v302
    %402 = vmatprep.subr.mxu0 0.0
    %403 = vmatpush1.msra.mxu0 %v303
    %404 = vmatprep.subr.mxu0 0.0
    %405 = vmatpush1.msra.mxu0 %v304
    %406 = vmatprep.subr.mxu0 0.0
    %407 = vmatpush1.msra.mxu0 %v305
    %408 = vmatprep.subr.mxu0 0.0
    %409 = vmatpush1.msra.mxu0 %v306
    %410 = vmatprep.mubr.f32.mxu0 %v60
    %411 = vmatmul.mubr.f32.gmra.mrb[0].mxu0 %v59
    %v412 = vpop.f32.mrb[0].mxu0
    %v413 = vadd.f32 %v344, %v412
    %v414 = vpop.f32.mrb[0].mxu0
    %415 = vdwg.mxu0
    %416 = vmatprep.subr.mxu0 0.0
    %417 = vmatpush1.msra.mxu0 %v307
    %418 = vmatprep.subr.mxu0 0.0
    %419 = vmatpush1.msra.mxu0 %v308
    %420 = vmatprep.subr.mxu0 0.0
    %421 = vmatpush1.msra.mxu0 %v309
    %422 = vmatprep.subr.mxu0 0.0
    %423 = vmatpush1.msra.mxu0 %v310
    %424 = vmatprep.subr.mxu0 0.0
    %425 = vmatpush1.msra.mxu0 %v311
    %426 = vmatprep.subr.mxu0 0.0
    %427 = vmatpush1.msra.mxu0 %v312
    %428 = vmatprep.subr.mxu0 0.0
    %429 = vmatpush1.msra.mxu0 %v313
    %430 = vmatprep.subr.mxu0 0.0
    %431 = vmatpush1.msra.mxu0 %v314
    %432 = vmatprep.subr.mxu0 0.0
    %433 = vmatpush1.msra.mxu0 %v315
    %434 = vmatprep.subr.mxu0 0.0
    %435 = vmatpush1.msra.mxu0 %v316
    %436 = vmatprep.subr.mxu0 0.0
    %437 = vmatpush1.msra.mxu0 %v317
    %438 = vmatprep.subr.mxu0 0.0
    %439 = vmatpush1.msra.mxu0 %v318
    %440 = vmatprep.subr.mxu0 0.0
    %441 = vmatpush1.msra.mxu0 %v319
    %442 = vmatprep.subr.mxu0 0.0
    %443 = vmatpush1.msra.mxu0 %v320
    %444 = vmatprep.subr.mxu0 0.0
    %445 = vmatpush1.msra.mxu0 %v321
    %446 = vmatprep.subr.mxu0 0.0
    %447 = vmatpush1.msra.mxu0 %v322
    %448 = vmatprep.subr.mxu0 0.0
    %449 = vmatpush1.msra.mxu0 %v323
    %450 = vmatprep.subr.mxu0 0.0
    %451 = vmatpush1.msra.mxu0 %v324
    %452 = vmatprep.subr.mxu0 0.0
    %453 = vmatpush1.msra.mxu0 %v325
    %454 = vmatprep.subr.mxu0 0.0
    %455 = vmatpush1.msra.mxu0 %v326
    %456 = vmatprep.subr.mxu0 0.0
    %457 = vmatpush1.msra.mxu0 %v327
    %458 = vmatprep.subr.mxu0 0.0
    %459 = vmatpush1.msra.mxu0 %v328
    %460 = vmatprep.subr.mxu0 0.0
    %461 = vmatpush1.msra.mxu0 %v329
    %462 = vmatprep.subr.mxu0 0.0
    %463 = vmatpush1.msra.mxu0 %v330
    %464 = vmatprep.subr.mxu0 0.0
    %465 = vmatpush1.msra.mxu0 %v331
    %466 = vmatprep.subr.mxu0 0.0
    %467 = vmatpush1.msra.mxu0 %v332
    %468 = vmatprep.subr.mxu0 0.0
    %469 = vmatpush1.msra.mxu0 %v333
    %470 = vmatprep.subr.mxu0 0.0
    %471 = vmatpush1.msra.mxu0 %v334
    %472 = vmatprep.subr.mxu0 0.0
    %473 = vmatpush1.msra.mxu0 %v335
    %474 = vmatprep.subr.mxu0 0.0
    %475 = vmatpush1.msra.mxu0 %v336
    %476 = vmatprep.subr.mxu0 0.0
    %477 = vmatpush1.msra.mxu0 %v337
    %478 = vmatprep.subr.mxu0 0.0
    %479 = vmatpush1.msra.mxu0 %v338
    %480 = vmatprep.mubr.f32.mxu0 %v62
    %481 = vmatmul.mubr.f32.gmra.mrb[0].mxu0 %v61
    %v482 = vpop.f32.mrb[0].mxu0
    %v483 = vadd.f32 %v413, %v482
    %v484 = vpop.f32.mrb[0].mxu0
    %485 = vdwg.mxu0
    %v486 = vxor.u32 %v483, 2147483648
    %v487 = vmul.f32 %v486, 1.442695
    %v488 = vpow.pop %v487
    %v489 = vadd.f32 %v488, 1.0
    %v490 = vrcp.pop %v489
    %v491 = vmul.f32 1.0, %v490
    %v492 = vmul.f32 %v274, %v491
    %v493 = vld [vmem:[%s5] sm:$0xff]
    %v494 = vld [vmem:[%s5 + $0x8] sm:$0xff]
    %v495 = vld [vmem:[%s5 + $0x10] sm:$0xff]
    %v496 = vld [vmem:[%s5 + $0x18] sm:$0xff]
    %v497 = vld [vmem:[%s5 + $0x20] sm:$0xff]
    %v498 = vld [vmem:[%s5 + $0x28] sm:$0xff]
    %v499 = vld [vmem:[%s5 + $0x30] sm:$0xff]
    %v500 = vld [vmem:[%s5 + $0x38] sm:$0xff]
    %v501 = vld [vmem:[%s5 + $0x40] sm:$0xff]
    %v502 = vld [vmem:[%s5 + $0x48] sm:$0xff]
    %v503 = vld [vmem:[%s5 + $0x50] sm:$0xff]
    %v504 = vld [vmem:[%s5 + $0x58] sm:$0xff]
    %v505 = vld [vmem:[%s5 + $0x60] sm:$0xff]
    %v506 = vld [vmem:[%s5 + $0x68] sm:$0xff]
    %v507 = vld [vmem:[%s5 + $0x70] sm:$0xff]
    %v508 = vld [vmem:[%s5 + $0x78] sm:$0xff]
    %v509 = vld [vmem:[#allocation2] sm:$0x1]
    %v511 = vlaneseq
    %v512 = vshrl.u32 %v511, 7
    %v513 = vsub.s32 0, %v512
    %v514 = vrot.slane %v509, %v513
    %516 = vmatprep.subr.mxu0 0.0
    %517 = vmatpush1.msra.mxu0 %v493
    %518 = vmatprep.subr.mxu0 0.0
    %519 = vmatpush1.msra.mxu0 %v494
    %520 = vmatprep.subr.mxu0 0.0
    %521 = vmatpush1.msra.mxu0 %v495
    %522 = vmatprep.subr.mxu0 0.0
    %523 = vmatpush1.msra.mxu0 %v496
    %524 = vmatprep.subr.mxu0 0.0
    %525 = vmatpush1.msra.mxu0 %v497
    %526 = vmatprep.subr.mxu0 0.0
    %527 = vmatpush1.msra.mxu0 %v498
    %528 = vmatprep.subr.mxu0 0.0
    %529 = vmatpush1.msra.mxu0 %v499
    %530 = vmatprep.subr.mxu0 0.0
    %531 = vmatpush1.msra.mxu0 %v500
    %532 = vmatprep.subr.mxu0 0.0
    %533 = vmatpush1.msra.mxu0 %v501
    %534 = vmatprep.subr.mxu0 0.0
    %535 = vmatpush1.msra.mxu0 %v502
    %536 = vmatprep.subr.mxu0 0.0
    %537 = vmatpush1.msra.mxu0 %v503
    %538 = vmatprep.subr.mxu0 0.0
    %539 = vmatpush1.msra.mxu0 %v504
    %540 = vmatprep.subr.mxu0 0.0
    %541 = vmatpush1.msra.mxu0 %v505
    %542 = vmatprep.subr.mxu0 0.0
    %543 = vmatpush1.msra.mxu0 %v506
    %544 = vmatprep.subr.mxu0 0.0
    %545 = vmatpush1.msra.mxu0 %v507
    %546 = vmatprep.subr.mxu0 0.0
    %547 = vmatpush1.msra.mxu0 %v508
    %548 = vmatprep.subr.mxu0 0.0
    %549 = vmatpush1.msra.mxu0 0.0
    %550 = vmatprep.subr.mxu0 0.0
    %551 = vmatpush1.msra.mxu0 0.0
    %552 = vmatprep.subr.mxu0 0.0
    %553 = vmatpush1.msra.mxu0 0.0
    %554 = vmatprep.subr.mxu0 0.0
    %555 = vmatpush1.msra.mxu0 0.0
    %556 = vmatprep.subr.mxu0 0.0
    %557 = vmatpush1.msra.mxu0 0.0
    %558 = vmatprep.subr.mxu0 0.0
    %559 = vmatpush1.msra.mxu0 0.0
    %560 = vmatprep.subr.mxu0 0.0
    %561 = vmatpush1.msra.mxu0 0.0
    %562 = vmatprep.subr.mxu0 0.0
    %563 = vmatpush1.msra.mxu0 0.0
    %564 = vmatprep.subr.mxu0 0.0
    %565 = vmatpush1.msra.mxu0 0.0
    %566 = vmatprep.subr.mxu0 0.0
    %567 = vmatpush1.msra.mxu0 0.0
    %568 = vmatprep.subr.mxu0 0.0
    %569 = vmatpush1.msra.mxu0 0.0
    %570 = vmatprep.subr.mxu0 0.0
    %571 = vmatpush1.msra.mxu0 0.0
    %572 = vmatprep.subr.mxu0 0.0
    %573 = vmatpush1.msra.mxu0 0.0
    %574 = vmatprep.subr.mxu0 0.0
    %575 = vmatpush1.msra.mxu0 0.0
    %576 = vmatprep.subr.mxu0 0.0
    %577 = vmatpush1.msra.mxu0 0.0
    %578 = vmatprep.subr.mxu0 0.0
    %579 = vmatpush1.msra.mxu0 0.0
    %580 = vmatprep.mubr.f32.mxu0 0.0
    %581 = vmatmul.mubr.f32.gmra.mrb[0].mxu0 %v492
    %v582 = vpop.f32.mrb[0].mxu0
    %v583 = vadd.f32 %v514, %v582
    %v584 = vpop.f32.mrb[0].mxu0
    %585 = vdwg.mxu0
    %vm586 = vcmask 7168
    %v587 = vsel %vm586, %v583, -inf
    %v588 = vrot.slane %v587, 4
    %v589 = vmax.f32 %v587, %v588
    %v590 = vrot.slane %v589, 2
    %v591 = vmax.f32 %v589, %v590
    %v592 = vrot.slane %v591, 1
    %v593 = vmax.f32 %v591, %v592
    %v594 = vsub.f32 %v583, %v593
    %v595 = vmul.f32 %v594, 1.442695
    %v596 = vpow.pop %v595
    %v597 = vsel %vm586, %v596, 0.0
    %v598 = vrot.slane %v597, 4
    %v599 = vadd.f32 %v597, %v598
    %v600 = vrot.slane %v599, 2
    %v601 = vadd.f32 %v599, %v600
    %v602 = vrot.slane %v601, 1
    %v603 = vadd.f32 %v601, %v602
    %v604 = vrcp.pop %v603
    %v605 = vmul.f32 %v596, %v604
    %606 = vst.msk [vmem:[%s8] sm:$0xff] %vm586, %v605
    %608 = vset.pattern.permute.xlu0 0
    %609 = vperm.xlu0 %608, %v605
    %v610 = vpop.permute.xlu0 %609
    %v612 = vmul.f32 %v610, %v59
    %v613 = vmul.f32 %v610, %v60
    %v614 = vmul.f32 %v610, %v61
    %v615 = vmul.f32 %v610, %v62
    %v616 = vrot.slane %v612, 4
    %v617 = vadd.f32 %v612, %v616
    %v618 = vrot.slane %v617, 2
    %v619 = vadd.f32 %v617, %v618
    %v620 = vrot.slane %v619, 1
    %v621 = vadd.f32 %v619, %v620
    %v622 = vrot.slane %v613, 4
    %v623 = vadd.f32 %v613, %v622
    %v624 = vrot.slane %v623, 2
    %v625 = vadd.f32 %v623, %v624
    %v626 = vrot.slane %v625, 1
    %v627 = vadd.f32 %v625, %v626
    %v628 = vrot.slane %v614, 4
    %v629 = vadd.f32 %v614, %v628
    %v630 = vrot.slane %v629, 2
    %v631 = vadd.f32 %v629, %v630
    %v632 = vrot.slane %v631, 1
    %v633 = vadd.f32 %v631, %v632
    %v634 = vrot.slane %v615, 4
    %v635 = vadd.f32 %v615, %v634
    %v636 = vrot.slane %v635, 2
    %v637 = vadd.f32 %v635, %v636
    %v638 = vrot.slane %v637, 1
    %v639 = vadd.f32 %v637, %v638
    %v644 = vcombine.low %v621, %v627
    %v645 = vcombine.low %v633, %v639
    %v647 = vunpack.c.l.s4 1966171168
    %v648 = vunpack.c.0.s8 %v647
    %v649 = vlaneseq
    %v650 = vshrl.u32 %v649, 7
    %v651 = vsub.s32 %v648, %v650
    %v652 = vrot.slane %v644, %v651
    %v654 = vunpack.c.l.s4 1966171168
    %v655 = vunpack.c.0.s8 %v654
    %v656 = vlaneseq
    %v657 = vshrl.u32 %v656, 7
    %v658 = vsub.s32 %v655, %v657
    %v659 = vrot.slane %v645, %v658
    %v660 = vcombine.low %v652, %v659
    %v662 = vunpack.c.l.s4 1966171168
    %v663 = vunpack.c.0.s8 %v662
    %v664 = vlaneseq
    %v665 = vshrl.u32 %v664, 7
    %v666 = vsub.s32 %v663, %v665
    %v667 = vrot.slane %v660, %v666
    %v669 = vlaneseq
    %vm670 = vcmp.ge.s32.totalorder %v669, 0
    %vm671 = vcmp.lt.s32.totalorder %v669, 512
    %vm672 = vmand %vm670, %vm671
    %673 = vst.msk [vmem:[#allocation8] sm:$0xf] %vm672, %v667
    // Predicated region
    $region38: #{tpu_custom_call.1} parent=1 // pred_check
      _
    $region39: #{tpu_custom_call.1} parent=1 // pred_check_branch
      %675 = sbr.rel (0) target = $region41
    $region40: #{tpu_custom_call.1} parent=1 // pred_region
      %s677 = ssub.s32 64, 64
      %678 = vsyncadd [#allocation5], %s677
      %s680 = sshll.u32 [#allocation8], 4
      %s681 = int_to_ptr.vmem [resolvable:$true] %s680
      %683 = dma.vmem_to_hbm [thread:$0]  %s681, 64, %s7, [#allocation5]
    $region41: #{tpu_custom_call.1} parent=1 // pred_fallthru
      _
    // Predicated region
    $region42: #{tpu_custom_call.1} parent=1 // pred_check
      _
    $region43: #{tpu_custom_call.1} parent=1 // pred_check_branch
      %685 = sbr.rel (0) target = $region45
    $region44: #{tpu_custom_call.1} parent=1 // pred_region
      _
    $region45: #{tpu_custom_call.1} parent=1 // pred_fallthru
      _
    // Predicated region
    $region46: #{tpu_custom_call.1} parent=1 // pred_check
      _
    $region47: #{tpu_custom_call.1} parent=1 // pred_check_branch
      %687 = sbr.rel (0) target = $region49
    $region48: #{tpu_custom_call.1} parent=1 // pred_region
      %688 = dma.done [#allocation5], 64
    $region49: #{tpu_custom_call.1} parent=1 // pred_fallthru
      _
    // Predicated region
    $region50: #{tpu_custom_call.1} parent=1 // pred_check
      _
    $region51: #{tpu_custom_call.1} parent=1 // pred_check_branch
      %690 = sbr.rel (0) target = $region53
    $region52: #{tpu_custom_call.1} parent=1 // pred_region
      _
    $region53: #{tpu_custom_call.1} parent=1 // pred_fallthru
      _
    %691 = vsyncpa [#allocation4], 1
    %692 = vsyncpa [#allocation7], 1
    %693 = vsyncpa [#allocation5], 1

</llo_original>
